<compile_context>
chip_gen: v5e
topology: v5e:2x2
jax: 0.10.0
libtpu: 0.0.40
codegen_flags: <defaults>
</compile_context>

<pallas_src>
import jax
import jax.numpy as jnp
from jax.experimental import pallas as pl
from jax.experimental.pallas import tpu as pltpu

LN_EPS = 1e-5


def _silu(x):
    return x * jax.nn.sigmoid(x)


def _round_up(n, m):
    return ((n + m - 1) // m) * m


def _choose_block_b(B, requested):
    """Pick a batch tile: multiple of 8, <= requested, and (when the batch is
    big enough) small enough to give >= 2 grid steps for megacore sharding."""
    bb = max(8, _round_up(min(requested, B), 8))
    if _round_up(B, bb) // bb < 2 and B > 8:
        bb = _round_up((B + 1) // 2, 8)
    return bb


def mlp_ln_act_kernel(x_ref, cond_ref, w_ref, b_ref, we_ref, be_ref,
                      g_ref, beta_ref, o_ref):
    # x_ref:    (TB, Cin)      cond_ref: (TB, Ccond)
    # w_ref:    (Cin, Cout)    b_ref:    (1, Cout)
    # we_ref:   (Ccond, Cout)  be_ref:   (1, Cout)   (condition_bias pre-folded)
    # g_ref/beta_ref: (1, Cout)   o_ref: (TB, Cout)

    # Load (possibly bf16) activations and upcast once; all math below in f32.
    x = x_ref[...].astype(jnp.float32)
    c_in = cond_ref[...].astype(jnp.float32)

    # main linear (MXU)
    h = jnp.dot(x, w_ref[...], preferred_element_type=jnp.float32) + b_ref[...]

    # cond path: silu -> linear_emb (MXU); condition_bias folded into be_ref
    c = _silu(c_in)
    c = jnp.dot(c, we_ref[...], preferred_element_type=jnp.float32) + be_ref[...]

    # modulation:  h * (condition_bias + cond)  ==  h * c  (bias folded)
    h = h * c

    # LayerNorm over out_channels, one pass: mean and E[h^2] in 2 reductions.
    mean = jnp.mean(h, axis=-1, keepdims=True)
    mean_sq = jnp.mean(h * h, axis=-1, keepdims=True)
    var = jnp.maximum(mean_sq - mean * mean, 0.0)
    h = (h - mean) * jax.lax.rsqrt(var + LN_EPS)
    h = h * g_ref[...] + beta_ref[...]

    # activation (silu); dropout=0 -> identity
    o_ref[...] = _silu(h).astype(o_ref.dtype)


def mlp_ln_act(x, cond, w, b, w_emb, b_emb, gamma, beta,
               *, condition_bias=1.0, block_b=512):
    B, Cin = x.shape
    Ccond = cond.shape[1]
    Cout = w.shape[1]

    bb = _choose_block_b(B, block_b)
    Bp = _round_up(B, bb)
    if Bp != B:
        pad = Bp - B
        x = jnp.pad(x, ((0, pad), (0, 0)))
        cond = jnp.pad(cond, ((0, pad), (0, 0)))

    # Fold condition_bias into the cond-path bias (one-time (1, Cout) op).
    b2 = b.astype(jnp.float32).reshape(1, Cout)
    be = b_emb.astype(jnp.float32).reshape(1, Cout) + jnp.float32(condition_bias)
    g2 = gamma.astype(jnp.float32).reshape(1, Cout)
    beta2 = beta.astype(jnp.float32).reshape(1, Cout)

    act_bytes = jnp.dtype(x.dtype).itemsize
    cost = pl.CostEstimate(
        flops=2 * Bp * (Cin + Ccond) * Cout,
        transcendentals=Bp * (Ccond + 2 * Cout),
        bytes_accessed=(Bp * (Cin + Ccond + Cout) * act_bytes
                        + (Cin + Ccond) * Cout * 4 + 4 * Cout * 4),
    )

    out = pl.pallas_call(
        mlp_ln_act_kernel,
        out_shape=jax.ShapeDtypeStruct((Bp, Cout), x.dtype),
        grid_spec=pltpu.PrefetchScalarGridSpec(
            num_scalar_prefetch=0,
            grid=(Bp // bb,),
            in_specs=[
                pl.BlockSpec((bb, Cin), lambda i: (i, 0)),
                pl.BlockSpec((bb, Ccond), lambda i: (i, 0)),
                pl.BlockSpec((Cin, Cout), lambda i: (0, 0)),
                pl.BlockSpec((1, Cout), lambda i: (0, 0)),
                pl.BlockSpec((Ccond, Cout), lambda i: (0, 0)),
                pl.BlockSpec((1, Cout), lambda i: (0, 0)),
                pl.BlockSpec((1, Cout), lambda i: (0, 0)),
                pl.BlockSpec((1, Cout), lambda i: (0, 0)),
            ],
            out_specs=pl.BlockSpec((bb, Cout), lambda i: (i, 0)),
        ),
        compiler_params=pltpu.CompilerParams(
            dimension_semantics=("parallel",)),
        cost_estimate=cost,
    )(x, cond, w, b2, w_emb, be, g2, beta2)

    return out[:B] if Bp != B else out


def reference(x, cond, w, b, w_emb, b_emb, gamma, beta, condition_bias):
    h = x.astype(jnp.float32) @ w + b.reshape(1, -1)
    c = _silu(cond.astype(jnp.float32)) @ w_emb + b_emb.reshape(1, -1)
    h = h * (condition_bias + c)
    mean = jnp.mean(h, axis=-1, keepdims=True)
    var = jnp.mean((h - mean) ** 2, axis=-1, keepdims=True)
    h = (h - mean) * jax.lax.rsqrt(var + LN_EPS)
    h = h * gamma.reshape(1, -1) + beta.reshape(1, -1)
    return _silu(h)


def _kaiming_normal(key, fan_in, fan_out, dtype=jnp.float32):
    # kaiming_normal_(nonlinearity='relu', mode='fan_in'): std = sqrt(2 / fan_in)
    std = jnp.sqrt(2.0 / fan_in)
    return jax.random.normal(key, (fan_in, fan_out), dtype) * std


def _linear_bias(key, fan_in, fan_out, dtype=jnp.float32):
    # PyTorch default Linear bias init: U(-1/sqrt(fan_in), 1/sqrt(fan_in))
    bound = 1.0 / jnp.sqrt(fan_in)
    return jax.random.uniform(key, (1, fan_out), dtype, -bound, bound)


if __name__ == "__main__":
    # MLPLNAct(in_channels=32, out_channels=64, norm=True, use_cond=True,
    #          activation=silu, cond_channels=16, condition_bias=1.0, dropout=0)
    Cin, Ccond, Cout = 32, 16, 64
    condition_bias = 1.0

    key = jax.random.PRNGKey(0)
    kx, kc, kw, kb, kwe, kbe = jax.random.split(key, 6)

    w = _kaiming_normal(kw, Cin, Cout)           # linear.weight (transposed)
    b = _linear_bias(kb, Cin, Cout)              # linear.bias
    w_emb = _kaiming_normal(kwe, Ccond, Cout)    # linear_emb.weight (transposed)
    b_emb = _linear_bias(kbe, Ccond, Cout)       # linear_emb.bias
    gamma = jnp.ones((1, Cout), jnp.float32)     # LayerNorm weight
    beta = jnp.zeros((1, Cout), jnp.float32)     # LayerNorm bias

    # 1) f32 activations, batch divisible by the tile
    B = 8
    x = jax.random.normal(kx, (B, Cin), jnp.float32)
    cond = jax.random.normal(kc, (B, Ccond), jnp.float32)
    out = jax.block_until_ready(
        mlp_ln_act(x, cond, w, b, w_emb, b_emb, gamma, beta,
                   condition_bias=condition_bias))
    ref = reference(x, cond, w, b, w_emb, b_emb, gamma, beta, condition_bias)
    assert out.shape == (B, Cout)
    assert jnp.allclose(out, ref, atol=1e-5, rtol=1e-5), "f32 mismatch"

    # 2) f32, ragged batch (exercises padding + a multi-step 'parallel' grid)
    B2 = 20
    x2 = jax.random.normal(kx, (B2, Cin), jnp.float32)
    cond2 = jax.random.normal(kc, (B2, Ccond), jnp.float32)
    out2 = jax.block_until_ready(
        mlp_ln_act(x2, cond2, w, b, w_emb, b_emb, gamma, beta,
                   condition_bias=condition_bias))
    ref2 = reference(x2, cond2, w, b, w_emb, b_emb, gamma, beta, condition_bias)
    assert out2.shape == (B2, Cout)
    assert jnp.allclose(out2, ref2, atol=1e-5, rtol=1e-5), "ragged mismatch"

    # 3) bf16 activation storage (halves HBM traffic); math stays f32 inside
    x_bf = x.astype(jnp.bfloat16)
    cond_bf = cond.astype(jnp.bfloat16)
    out_bf = jax.block_until_ready(
        mlp_ln_act(x_bf, cond_bf, w, b, w_emb, b_emb, gamma, beta,
                   condition_bias=condition_bias))
    ref_bf = reference(x_bf.astype(jnp.float32), cond_bf.astype(jnp.float32),
                       w, b, w_emb, b_emb, gamma, beta, condition_bias)
    assert out_bf.dtype == jnp.bfloat16
    assert jnp.allclose(out_bf.astype(jnp.float32), ref_bf,
                        atol=2e-2, rtol=2e-2), "bf16 mismatch"

    print("KERNEL_OK")
</pallas_src>

<mosaic_0001>
module attributes {stable_mosaic.version = 11 : i64} {
  func.func @mlp_ln_act_kernel(%arg0: i32, %arg1: memref<8x32xf32, #tpu.memory_space<vmem>>, %arg2: memref<8x16xf32, #tpu.memory_space<vmem>>, %arg3: memref<32x64xf32, #tpu.memory_space<vmem>>, %arg4: memref<1x64xf32, #tpu.memory_space<vmem>>, %arg5: memref<16x64xf32, #tpu.memory_space<vmem>>, %arg6: memref<1x64xf32, #tpu.memory_space<vmem>>, %arg7: memref<1x64xf32, #tpu.memory_space<vmem>>, %arg8: memref<1x64xf32, #tpu.memory_space<vmem>>, %arg9: memref<8x64xf32, #tpu.memory_space<vmem>>) attributes {dimension_semantics = [#tpu.dimension_semantics<parallel>], iteration_bounds = array<i64: 1>, scalar_prefetch = 0 : i64, scratch_operands = 0 : i64, tpu.core_type = #tpu.core_type<tc>, window_params = [{transform_indices = @transform_0, window_bounds = array<i64: 8, 32>}, {transform_indices = @transform_1, window_bounds = array<i64: 8, 16>}, {pipeline_mode = #tpu.pipeline_mode<synchronous>, transform_indices = @transform_2, window_bounds = array<i64: 32, 64>}, {pipeline_mode = #tpu.pipeline_mode<synchronous>, transform_indices = @transform_3, window_bounds = array<i64: 1, 64>}, {pipeline_mode = #tpu.pipeline_mode<synchronous>, transform_indices = @transform_4, window_bounds = array<i64: 16, 64>}, {pipeline_mode = #tpu.pipeline_mode<synchronous>, transform_indices = @transform_5, window_bounds = array<i64: 1, 64>}, {pipeline_mode = #tpu.pipeline_mode<synchronous>, transform_indices = @transform_6, window_bounds = array<i64: 1, 64>}, {pipeline_mode = #tpu.pipeline_mode<synchronous>, transform_indices = @transform_7, window_bounds = array<i64: 1, 64>}, {transform_indices = @transform_8, window_bounds = array<i64: 8, 64>}]} {
    %c0 = arith.constant 0 : index
    %c0_0 = arith.constant 0 : index
    %0 = vector.load %arg1[%c0, %c0_0] : memref<8x32xf32, #tpu.memory_space<vmem>>, vector<8x32xf32>
    %c0_1 = arith.constant 0 : index
    %c0_2 = arith.constant 0 : index
    %1 = vector.load %arg2[%c0_1, %c0_2] : memref<8x16xf32, #tpu.memory_space<vmem>>, vector<8x16xf32>
    %c0_3 = arith.constant 0 : index
    %c0_4 = arith.constant 0 : index
    %2 = vector.load %arg3[%c0_3, %c0_4] : memref<32x64xf32, #tpu.memory_space<vmem>>, vector<32x64xf32>
    %cst = arith.constant dense<0.000000e+00> : vector<8x64xf32>
    %3 = tpu.matmul %0, %2, %cst {dimension_numbers = #tpu.dot_dimension_numbers<[1], [0], [0], [1], [0, 0, 1, 1], [], []>} : vector<8x32xf32>, vector<32x64xf32>, vector<8x64xf32> -> vector<8x64xf32>
    %c0_5 = arith.constant 0 : index
    %c0_6 = arith.constant 0 : index
    %4 = vector.load %arg4[%c0_5, %c0_6] : memref<1x64xf32, #tpu.memory_space<vmem>>, vector<1x64xf32>
    %5 = vector.broadcast %4 : vector<1x64xf32> to vector<8x64xf32>
    %6 = arith.addf %3, %5 : vector<8x64xf32>
    %7 = arith.negf %1 : vector<8x16xf32>
    %8 = math.exp %7 : vector<8x16xf32>
    %cst_7 = arith.constant 1.000000e+00 : f32
    %9 = vector.broadcast %cst_7 : f32 to vector<8x16xf32>
    %10 = arith.addf %9, %8 : vector<8x16xf32>
    %11 = arith.divf %9, %10 : vector<8x16xf32>
    %12 = arith.mulf %1, %11 : vector<8x16xf32>
    %c0_8 = arith.constant 0 : index
    %c0_9 = arith.constant 0 : index
    %13 = vector.load %arg5[%c0_8, %c0_9] : memref<16x64xf32, #tpu.memory_space<vmem>>, vector<16x64xf32>
    %cst_10 = arith.constant dense<0.000000e+00> : vector<8x64xf32>
    %14 = tpu.matmul %12, %13, %cst_10 {dimension_numbers = #tpu.dot_dimension_numbers<[1], [0], [0], [1], [0, 0, 1, 1], [], []>} : vector<8x16xf32>, vector<16x64xf32>, vector<8x64xf32> -> vector<8x64xf32>
    %c0_11 = arith.constant 0 : index
    %c0_12 = arith.constant 0 : index
    %15 = vector.load %arg6[%c0_11, %c0_12] : memref<1x64xf32, #tpu.memory_space<vmem>>, vector<1x64xf32>
    %16 = vector.broadcast %15 : vector<1x64xf32> to vector<8x64xf32>
    %17 = arith.addf %14, %16 : vector<8x64xf32>
    %18 = arith.mulf %6, %17 : vector<8x64xf32>
    %cst_13 = arith.constant dense<0.000000e+00> : vector<8xf32>
    %19 = vector.multi_reduction <add>, %18, %cst_13 [1] : vector<8x64xf32> to vector<8xf32>
    %20 = vector.shape_cast %19 : vector<8xf32> to vector<8x1xf32>
    %cst_14 = arith.constant 6.400000e+01 : f32
    %21 = vector.broadcast %cst_14 : f32 to vector<8x1xf32>
    %22 = arith.divf %20, %21 : vector<8x1xf32>
    %23 = arith.mulf %18, %18 : vector<8x64xf32>
    %cst_15 = arith.constant dense<0.000000e+00> : vector<8xf32>
    %24 = vector.multi_reduction <add>, %23, %cst_15 [1] : vector<8x64xf32> to vector<8xf32>
    %25 = vector.shape_cast %24 : vector<8xf32> to vector<8x1xf32>
    %cst_16 = arith.constant 6.400000e+01 : f32
    %26 = vector.broadcast %cst_16 : f32 to vector<8x1xf32>
    %27 = arith.divf %25, %26 : vector<8x1xf32>
    %28 = arith.mulf %22, %22 : vector<8x1xf32>
    %29 = arith.subf %27, %28 : vector<8x1xf32>
    %cst_17 = arith.constant 0.000000e+00 : f32
    %30 = vector.broadcast %cst_17 : f32 to vector<8x1xf32>
    %31 = arith.maximumf %29, %30 : vector<8x1xf32>
    %32 = vector.broadcast %22 : vector<8x1xf32> to vector<8x64xf32>
    %33 = arith.subf %18, %32 : vector<8x64xf32>
    %cst_18 = arith.constant 9.99999974E-6 : f32
    %34 = vector.broadcast %cst_18 : f32 to vector<8x1xf32>
    %35 = arith.addf %31, %34 : vector<8x1xf32>
    %36 = math.rsqrt %35 : vector<8x1xf32>
    %37 = vector.broadcast %36 : vector<8x1xf32> to vector<8x64xf32>
    %38 = arith.mulf %33, %37 : vector<8x64xf32>
    %c0_19 = arith.constant 0 : index
    %c0_20 = arith.constant 0 : index
    %39 = vector.load %arg7[%c0_19, %c0_20] : memref<1x64xf32, #tpu.memory_space<vmem>>, vector<1x64xf32>
    %40 = vector.broadcast %39 : vector<1x64xf32> to vector<8x64xf32>
    %41 = arith.mulf %38, %40 : vector<8x64xf32>
    %c0_21 = arith.constant 0 : index
    %c0_22 = arith.constant 0 : index
    %42 = vector.load %arg8[%c0_21, %c0_22] : memref<1x64xf32, #tpu.memory_space<vmem>>, vector<1x64xf32>
    %43 = vector.broadcast %42 : vector<1x64xf32> to vector<8x64xf32>
    %44 = arith.addf %41, %43 : vector<8x64xf32>
    %45 = arith.negf %44 : vector<8x64xf32>
    %46 = math.exp %45 : vector<8x64xf32>
    %cst_23 = arith.constant 1.000000e+00 : f32
    %47 = vector.broadcast %cst_23 : f32 to vector<8x64xf32>
    %48 = arith.addf %47, %46 : vector<8x64xf32>
    %49 = arith.divf %47, %48 : vector<8x64xf32>
    %50 = arith.mulf %44, %49 : vector<8x64xf32>
    %c0_24 = arith.constant 0 : index
    %c0_25 = arith.constant 0 : index
    %51 = vector.load %arg9[%c0_24, %c0_25] : memref<8x64xf32, #tpu.memory_space<vmem>>, vector<8x64xf32>
    tpu.vector_store %arg9[%c0_24, %c0_25], %50 {strides = array<i32>} : memref<8x64xf32, #tpu.memory_space<vmem>>, vector<8x64xf32>,
    return
  }
  func.func @transform_0(%arg0: i32) -> (i32, i32) {
    %c0_i32 = arith.constant 0 : i32
    %c0_i32_0 = arith.constant 0 : i32
    return %arg0, %c0_i32 : i32, i32
  }
  func.func @transform_1(%arg0: i32) -> (i32, i32) {
    %c0_i32 = arith.constant 0 : i32
    %c0_i32_0 = arith.constant 0 : i32
    return %arg0, %c0_i32 : i32, i32
  }
  func.func @transform_2(%arg0: i32) -> (i32, i32) {
    %c0_i32 = arith.constant 0 : i32
    %c0_i32_0 = arith.constant 0 : i32
    %c0_i32_1 = arith.constant 0 : i32
    return %c0_i32, %c0_i32_0 : i32, i32
  }
  func.func @transform_3(%arg0: i32) -> (i32, i32) {
    %c0_i32 = arith.constant 0 : i32
    %c0_i32_0 = arith.constant 0 : i32
    %c0_i32_1 = arith.constant 0 : i32
    return %c0_i32, %c0_i32_0 : i32, i32
  }
  func.func @transform_4(%arg0: i32) -> (i32, i32) {
    %c0_i32 = arith.constant 0 : i32
    %c0_i32_0 = arith.constant 0 : i32
    %c0_i32_1 = arith.constant 0 : i32
    return %c0_i32, %c0_i32_0 : i32, i32
  }
  func.func @transform_5(%arg0: i32) -> (i32, i32) {
    %c0_i32 = arith.constant 0 : i32
    %c0_i32_0 = arith.constant 0 : i32
    %c0_i32_1 = arith.constant 0 : i32
    return %c0_i32, %c0_i32_0 : i32, i32
  }
  func.func @transform_6(%arg0: i32) -> (i32, i32) {
    %c0_i32 = arith.constant 0 : i32
    %c0_i32_0 = arith.constant 0 : i32
    %c0_i32_1 = arith.constant 0 : i32
    return %c0_i32, %c0_i32_0 : i32, i32
  }
  func.func @transform_7(%arg0: i32) -> (i32, i32) {
    %c0_i32 = arith.constant 0 : i32
    %c0_i32_0 = arith.constant 0 : i32
    %c0_i32_1 = arith.constant 0 : i32
    return %c0_i32, %c0_i32_0 : i32, i32
  }
  func.func @transform_8(%arg0: i32) -> (i32, i32) {
    %c0_i32 = arith.constant 0 : i32
    %c0_i32_0 = arith.constant 0 : i32
    return %arg0, %c0_i32 : i32, i32
  }
}

</mosaic_0001>

<llo_original>
// kernel: tpu_custom_call.1
$region0: #{tpu_custom_call.1}
  #allocation0 [shape = 'u32[]', space=smem, size = 0x4, offset = 0x4, fixed_abs, tag = 'smem constant byte address 0x4 - core index']
  #allocation1 [shape = 'u32[72,128]{1,0:T(1,128)}', space=vmem, size = 0x9000, scoped, tag = 'internal scratch']
  %s0 = inlined_call_operand.hbm [shape: f32[8,32], index: 0, kind: input, shape index: {}]
  %s1 = inlined_call_operand.hbm [shape: f32[8,16], index: 1, kind: input, shape index: {}]
  %s2 = inlined_call_operand.hbm [shape: f32[32,64], index: 2, kind: input, shape index: {}]
  %s3 = inlined_call_operand.vmem [shape: f32[1,64], index: 3, kind: input, shape index: {}]
  %s4 = inlined_call_operand.hbm [shape: f32[16,64], index: 4, kind: input, shape index: {}]
  %s5 = inlined_call_operand.vmem [shape: f32[1,64], index: 5, kind: input, shape index: {}]
  %s6 = inlined_call_operand.vmem [shape: f32[1,64], index: 6, kind: input, shape index: {}]
  %s7 = inlined_call_operand.vmem [shape: f32[1,64], index: 7, kind: input, shape index: {}]
  %s8 = inlined_call_operand.hbm [shape: f32[8,64], index: 8, kind: output, shape index: {}]
  %s9 = sld [smem:[#allocation0]]
  $region58: #{tpu_custom_call.1} parent=0
    _
  %s11 = ssub.s32 1, %s9
  %s12 = scalar_select 0, %s11, %s9
  $region1: #{tpu_custom_call.1} parent=0
    #allocation2 [shape = 'u8[4096]{0}', space=vmem, size = 0x1000, scoped, tag = 'input window, operand 0, single buffered']
    #allocation3 [shape = 's32[1]{0}', space=sflag, size = 0x4, scoped, tag = 'scoped memory for tpu_custom_call.1']
    #allocation4 [shape = 's32[1]{0}', space=sflag, size = 0x4, scoped, tag = 'scoped memory for tpu_custom_call.1']
    #allocation5 [shape = 'u8[4096]{0}', space=vmem, size = 0x1000, scoped, tag = 'input window, operand 1, single buffered']
    #allocation6 [shape = 's32[1]{0}', space=sflag, size = 0x4, scoped, tag = 'scoped memory for tpu_custom_call.1']
    #allocation7 [shape = 'u8[16384]{0}', space=vmem, size = 0x4000, scoped, tag = 'input window, operand 2, single buffered']
    #allocation8 [shape = 'u8[8192]{0}', space=vmem, size = 0x2000, scoped, tag = 'input window, operand 4, single buffered']
    #allocation9 [shape = 's32[1]{0}', space=sflag, size = 0x4, scoped, tag = 'scoped memory for tpu_custom_call.1']
    #allocation10 [shape = 'u8[4096]{0}', space=vmem, size = 0x1000, scoped, tag = 'output window, operand 0, single buffered']
    %13 = vsyncpa [#allocation3], 0
    %14 = vsyncpa [#allocation6], 0
    %15 = vsyncpa [#allocation9], 0
    %16 = vsyncpa [#allocation4], 0
    // Predicated region
    $region2: #{tpu_custom_call.1} parent=1 // pred_check
      _
    $region3: #{tpu_custom_call.1} parent=1 // pred_check_branch
      %18 = sbr.rel (0) target = $region5
    $region4: #{tpu_custom_call.1} parent=1 // pred_region
      %20 = vsyncadd [#allocation3], 0
      %s22 = sshll.u32 %s0, 4
      %s23 = int_to_ptr.hbm [resolvable:$true] %s22
      %s24 = sshll.u32 [#allocation2], 4
      %s25 = int_to_ptr.vmem [resolvable:$true] %s24
      %27 = dma.hbm_to_vmem [thread:$0]  %s23, 128, %s25, [#allocation3]
    $region5: #{tpu_custom_call.1} parent=1 // pred_fallthru
      _
    // Predicated region
    $region6: #{tpu_custom_call.1} parent=1 // pred_check
      _
    $region7: #{tpu_custom_call.1} parent=1 // pred_check_branch
      %29 = sbr.rel (0) target = $region9
    $region8: #{tpu_custom_call.1} parent=1 // pred_region
      %31 = vsyncadd [#allocation6], 0
      %s33 = sshll.u32 %s1, 4
      %s34 = int_to_ptr.hbm [resolvable:$true] %s33
      %s35 = sshll.u32 [#allocation5], 4
      %s36 = int_to_ptr.vmem [resolvable:$true] %s35
      %38 = dma.hbm_to_vmem [thread:$0]  %s34, 128, %s36, [#allocation6]
    $region9: #{tpu_custom_call.1} parent=1 // pred_fallthru
      _
    // Predicated region
    $region10: #{tpu_custom_call.1} parent=1 // pred_check
      _
    $region11: #{tpu_custom_call.1} parent=1 // pred_check_branch
      %40 = sbr.rel (0) target = $region13
    $region12: #{tpu_custom_call.1} parent=1 // pred_region
      %42 = vsyncadd [#allocation6], 0
      %s43 = sshll.u32 %s2, 4
      %s44 = int_to_ptr.hbm [resolvable:$true] %s43
      %s45 = sshll.u32 [#allocation7], 4
      %s46 = int_to_ptr.vmem [resolvable:$true] %s45
      %51 = dma.hbm_to_vmem [thread:$0]  %s44, 512, %s46, [#allocation6], 128, 128, 8
    $region13: #{tpu_custom_call.1} parent=1 // pred_fallthru
      _
    // Predicated region
    $region14: #{tpu_custom_call.1} parent=1 // pred_check
      _
    $region15: #{tpu_custom_call.1} parent=1 // pred_check_branch
      %53 = sbr.rel (0) target = $region17
    $region16: #{tpu_custom_call.1} parent=1 // pred_region
      _
    $region17: #{tpu_custom_call.1} parent=1 // pred_fallthru
      _
    // Predicated region
    $region18: #{tpu_custom_call.1} parent=1 // pred_check
      _
    $region19: #{tpu_custom_call.1} parent=1 // pred_check_branch
      %55 = sbr.rel (0) target = $region21
    $region20: #{tpu_custom_call.1} parent=1 // pred_region
      %57 = vsyncadd [#allocation9], 0
      %s58 = sshll.u32 %s4, 4
      %s59 = int_to_ptr.hbm [resolvable:$true] %s58
      %s60 = sshll.u32 [#allocation8], 4
      %s61 = int_to_ptr.vmem [resolvable:$true] %s60
      %66 = dma.hbm_to_vmem [thread:$0]  %s59, 256, %s61, [#allocation9], 128, 128, 8
    $region21: #{tpu_custom_call.1} parent=1 // pred_fallthru
      _
    // Predicated region
    $region22: #{tpu_custom_call.1} parent=1 // pred_check
      _
    $region23: #{tpu_custom_call.1} parent=1 // pred_check_branch
      %68 = sbr.rel (0) target = $region25
    $region24: #{tpu_custom_call.1} parent=1 // pred_region
      _
    $region25: #{tpu_custom_call.1} parent=1 // pred_fallthru
      _
    // Predicated region
    $region26: #{tpu_custom_call.1} parent=1 // pred_check
      _
    $region27: #{tpu_custom_call.1} parent=1 // pred_check_branch
      %70 = sbr.rel (0) target = $region29
    $region28: #{tpu_custom_call.1} parent=1 // pred_region
      _
    $region29: #{tpu_custom_call.1} parent=1 // pred_fallthru
      _
    // Predicated region
    $region30: #{tpu_custom_call.1} parent=1 // pred_check
      _
    $region31: #{tpu_custom_call.1} parent=1 // pred_check_branch
      %72 = sbr.rel (0) target = $region33
    $region32: #{tpu_custom_call.1} parent=1 // pred_region
      _
    $region33: #{tpu_custom_call.1} parent=1 // pred_fallthru
      _
    // Predicated region
    $region34: #{tpu_custom_call.1} parent=1 // pred_check
      _
    $region35: #{tpu_custom_call.1} parent=1 // pred_check_branch
      %74 = sbr.rel (0) target = $region37
    $region36: #{tpu_custom_call.1} parent=1 // pred_region
      %76 = dma.done [#allocation3], 128
    $region37: #{tpu_custom_call.1} parent=1 // pred_fallthru
      _
    // Predicated region
    $region38: #{tpu_custom_call.1} parent=1 // pred_check
      _
    $region39: #{tpu_custom_call.1} parent=1 // pred_check_branch
      %78 = sbr.rel (0) target = $region41
    $region40: #{tpu_custom_call.1} parent=1 // pred_region
      %80 = dma.done [#allocation6], 128
    $region41: #{tpu_custom_call.1} parent=1 // pred_fallthru
      _
    // Predicated region
    $region42: #{tpu_custom_call.1} parent=1 // pred_check
      _
    $region43: #{tpu_custom_call.1} parent=1 // pred_check_branch
      %82 = sbr.rel (0) target = $region45
    $region44: #{tpu_custom_call.1} parent=1 // pred_region
      %84 = dma.done [#allocation6], 512
    $region45: #{tpu_custom_call.1} parent=1 // pred_fallthru
      _
    // Predicated region
    $region46: #{tpu_custom_call.1} parent=1 // pred_check
      _
    $region47: #{tpu_custom_call.1} parent=1 // pred_check_branch
      %86 = sbr.rel (0) target = $region49
    $region48: #{tpu_custom_call.1} parent=1 // pred_region
      %88 = dma.done [#allocation9], 256
    $region49: #{tpu_custom_call.1} parent=1 // pred_fallthru
      _
    %v89 = vld [vmem:[#allocation2] sm:$0xff]
    %v90 = vld [vmem:[#allocation5] sm:$0xff]
    %v91 = vld [vmem:[#allocation7] sm:$0xff]
    %v92 = vld [vmem:[#allocation7 + $0x8] sm:$0xff]
    %v93 = vld [vmem:[#allocation7 + $0x10] sm:$0xff]
    %v94 = vld [vmem:[#allocation7 + $0x18] sm:$0xff]
    %v95 = vld [vmem:[%s3] sm:$0x1]
    %v97 = vperm.slane %v95, 0
    %vm99 = vcmask 261120
    %v101 = vsel %vm99, %v89, 0
    %103 = vmatpush.msra.mxu0 0.0
    %104 = vmatpush.msra.mxu0 0.0
    %105 = vmatpush.msra.mxu0 0.0
    %106 = vmatpush.msra.mxu0 0.0
    %107 = vmatpush.msra.mxu0 0.0
    %108 = vmatpush.msra.mxu0 0.0
    %109 = vmatpush.msra.mxu0 0.0
    %110 = vmatpush.msra.mxu0 0.0
    %111 = vmatpush.msra.mxu0 0.0
    %112 = vmatpush.msra.mxu0 0.0
    %113 = vmatpush.msra.mxu0 0.0
    %114 = vmatpush.msra.mxu0 0.0
    %115 = vmatpush.msra.mxu0 %v94
    %116 = vmatpush.msra.mxu0 %v93
    %117 = vmatpush.msra.mxu0 %v92
    %118 = vmatpush.msra.mxu0 %v91
    %119 = vmatmul.f32.gmra.mxu0 %v101
    %v120 = vpop.f32.mrf.mxu0
    %v121 = vadd.f32 %v97, %v120
    %122 = vdwg.mxu0
    %v123 = vxor.u32 %v90, 2147483648
    %v124 = vmul.f32 %v123, 1.442695
    %v125 = vpow.pop %v124
    %v126 = vadd.f32 %v125, 1.0
    %v127 = vrcp.pop %v126
    %v128 = vmul.f32 %v126, %v127
    %v129 = vsub.f32 1.0, %v128
    %v130 = vmul.f32 %v127, %v129
    %v131 = vadd.f32 %v127, %v130
    %vm132 = vweird.f32 %v126
    %vm133 = vweird.f32 %v127
    %vm134 = vmor %vm132, %vm133
    %v135 = vsel %vm134, %v127, %v131
    %v136 = vand.u32 2147483647, %v126
    %vm137 = vcmp.eq.f32.partialorder %v136, 8.507059e+37
    %v138 = vand.u32 %v126, 2147483648
    %v139 = vor.u32 1.1754944e-38, %v138
    %v140 = vsel %vm137, %v139, %v135
    %v141 = vmul.f32 1.0, %v140
    %v142 = vmul.f32 %v90, %v141
    %v143 = vld [vmem:[#allocation8] sm:$0xff]
    %v144 = vld [vmem:[#allocation8 + $0x8] sm:$0xff]
    %v145 = vld [vmem:[%s5] sm:$0x1]
    %v147 = vperm.slane %v145, 0
    %vm149 = vcmask 130048
    %v151 = vsel %vm149, %v142, 0
    %153 = vmatpush.msra.mxu0 0.0
    %154 = vmatpush.msra.mxu0 0.0
    %155 = vmatpush.msra.mxu0 0.0
    %156 = vmatpush.msra.mxu0 0.0
    %157 = vmatpush.msra.mxu0 0.0
    %158 = vmatpush.msra.mxu0 0.0
    %159 = vmatpush.msra.mxu0 0.0
    %160 = vmatpush.msra.mxu0 0.0
    %161 = vmatpush.msra.mxu0 0.0
    %162 = vmatpush.msra.mxu0 0.0
    %163 = vmatpush.msra.mxu0 0.0
    %164 = vmatpush.msra.mxu0 0.0
    %165 = vmatpush.msra.mxu0 0.0
    %166 = vmatpush.msra.mxu0 0.0
    %167 = vmatpush.msra.mxu0 %v144
    %168 = vmatpush.msra.mxu0 %v143
    %169 = vmatmul.f32.gmra.mxu0 %v151
    %v170 = vpop.f32.mrf.mxu0
    %v171 = vadd.f32 %v147, %v170
    %172 = vdwg.mxu0
    %v173 = vmul.f32 %v121, %v171
    %vm174 = vcmask 523264
    %v175 = vsel %vm174, %v173, 0.0
    %176 = vadd.xlane.f32.xlu0 %v175
    %v177 = vpop.xlane.xlu0 %176
    %v178 = vrcp.pop 64.0
    %v179 = vmul.f32 64.0, %v178
    %v180 = vsub.f32 1.0, %v179
    %v181 = vmul.f32 %v178, %v180
    %v182 = vadd.f32 %v178, %v181
    %vm183 = vweird.f32 %v178
    %v184 = vsel %vm183, %v178, %v182
    %v185 = vmul.f32 %v177, %v184
    %v186 = vmul.f32 %v173, %v173
    %v187 = vsel %vm174, %v186, 0.0
    %188 = vadd.xlane.f32.xlu0 %v187
    %v189 = vpop.xlane.xlu0 %188
    %v190 = vmul.f32 %v189, %v184
    %v191 = vmul.f32 %v185, %v185
    %v192 = vsub.f32 %v190, %v191
    %v193 = vmax.f32 %v192, 0.0
    %v194 = vsub.f32 %v173, %v185
    %v195 = vadd.f32 %v193, 1e-05
    %v196 = vrsqrt.pop %v195
    %v197 = vmul.f32 %v196, %v195
    %v198 = vmul.f32 %v197, %v196
    %v199 = vmul.f32 0.5, %v198
    %v200 = vsub.f32 1.5, %v199
    %v201 = vmul.f32 %v196, %v200
    %vm202 = vweird.f32 %v195
    %vm203 = vweird.f32 %v196
    %vm204 = vmor %vm202, %vm203
    %v205 = vsel %vm204, %v196, %v201
    %v206 = vmul.f32 %v194, %v205
    %v207 = vld [vmem:[%s6] sm:$0x1]
    %v209 = vperm.slane %v207, 0
    %v211 = vmul.f32 %v206, %v209
    %v212 = vld [vmem:[%s7] sm:$0x1]
    %v214 = vperm.slane %v212, 0
    %v216 = vadd.f32 %v211, %v214
    %v217 = vxor.u32 %v216, 2147483648
    %v218 = vmul.f32 %v217, 1.442695
    %v219 = vpow.pop %v218
    %v220 = vadd.f32 %v219, 1.0
    %v221 = vrcp.pop %v220
    %v222 = vmul.f32 %v220, %v221
    %v223 = vsub.f32 1.0, %v222
    %v224 = vmul.f32 %v221, %v223
    %v225 = vadd.f32 %v221, %v224
    %vm226 = vweird.f32 %v220
    %vm227 = vweird.f32 %v221
    %vm228 = vmor %vm226, %vm227
    %v229 = vsel %vm228, %v221, %v225
    %v230 = vand.u32 2147483647, %v220
    %vm231 = vcmp.eq.f32.partialorder %v230, 8.507059e+37
    %v232 = vand.u32 %v220, 2147483648
    %v233 = vor.u32 1.1754944e-38, %v232
    %v234 = vsel %vm231, %v233, %v229
    %v235 = vmul.f32 1.0, %v234
    %v236 = vmul.f32 %v216, %v235
    %237 = vst.msk [vmem:[#allocation10] sm:$0xff] %vm174, %v236
    // Predicated region
    $region50: #{tpu_custom_call.1} parent=1 // pred_check
      _
    $region51: #{tpu_custom_call.1} parent=1 // pred_check_branch
      %239 = sbr.rel (0) target = $region53
    $region52: #{tpu_custom_call.1} parent=1 // pred_region
      %241 = vsyncadd [#allocation4], 0
      %s243 = sshll.u32 [#allocation10], 4
      %s244 = int_to_ptr.vmem [resolvable:$true] %s243
      %s245 = sshll.u32 %s8, 4
      %s246 = int_to_ptr.hbm [resolvable:$true] %s245
      %248 = dma.vmem_to_hbm [thread:$0]  %s244, 128, %s246, [#allocation4]
    $region53: #{tpu_custom_call.1} parent=1 // pred_fallthru
      _
    // Predicated region
    $region54: #{tpu_custom_call.1} parent=1 // pred_check
      _
    $region55: #{tpu_custom_call.1} parent=1 // pred_check_branch
      %250 = sbr.rel (0) target = $region57
    $region56: #{tpu_custom_call.1} parent=1 // pred_region
      %252 = dma.done [#allocation4], 128
    $region57: #{tpu_custom_call.1} parent=1 // pred_fallthru
      _
    %253 = vsyncpa [#allocation3], 1
    %254 = vsyncpa [#allocation6], 1
    %255 = vsyncpa [#allocation9], 1
    %256 = vsyncpa [#allocation4], 1

</llo_original>
